<compile_context>
chip_gen: v7x
topology: tpu7x:2x2x1
jax: 0.10.0
libtpu: 0.0.40
codegen_flags: <defaults>
</compile_context>

<pallas_src>
import numpy as np
import jax
import jax.numpy as jnp
from jax.experimental import pallas as pl
from jax.experimental.pallas import tpu as pltpu


# --------------------------------------------------------------------------
# Host-side constant operators (pure numpy, depend only on shapes).
# --------------------------------------------------------------------------
def _up2_matrix(n):
    """U (2n, n): bilinear x2, align_corners=False, edge-clamped.
    out[2i]   = 0.25*x[max(i-1,0)] + 0.75*x[i]
    out[2i+1] = 0.75*x[i]          + 0.25*x[min(i+1,n-1)]"""
    U = np.zeros((2 * n, n), np.float32)
    for i in range(n):
        U[2 * i, max(i - 1, 0)] += 0.25
        U[2 * i, i] += 0.75
        U[2 * i + 1, i] += 0.75
        U[2 * i + 1, min(i + 1, n - 1)] += 0.25
    return U


def _shifted(U, d):
    """A_d = S_d @ U, i.e. A_d[y] = U[y + d - 1] with zero rows outside [0, 2n)."""
    n2 = U.shape[0]
    A = np.zeros_like(U)
    lo = max(0, 1 - d)
    hi = min(n2, n2 + 1 - d)
    A[lo:hi] = U[lo + d - 1: hi + d - 1]
    return A


# --------------------------------------------------------------------------
# Kernel: one block of `nb` images per grid step, everything resident in VMEM.
# --------------------------------------------------------------------------
def _upsample_conv_kernel(x_ref, a_ref, c_ref, b_ref, o_ref):
    """x_ref : (nb*H, Ci*W)        input rows for this block (VMEM)
       a_ref : (3, 2H, H)          A_dy = S_dy @ U_h row operators (VMEM, f32)
       c_ref : (Ci*W, 3*Co*2W)     weight-folded column operator (VMEM, f32)
       b_ref : (1, Co*2W)          bias repeated along lanes (VMEM, f32)
       o_ref : (nb*2H, Co*2W)      output rows for this block (VMEM)"""
    Ho, H = a_ref.shape[1], a_ref.shape[2]
    CoWo = o_ref.shape[1]
    nb = x_ref.shape[0] // H

    # Stage 1: one lane-dense MXU matmul over the whole image block.
    #   q[h, dy*CoWo + co*Wo + wo] = sum_{ci,w} x[h, ci*W+w] * C[dy][ci*W+w, co*Wo+wo]
    x = x_ref[...].astype(jnp.float32)                                  # (nb*H, Ci*W)
    q = jnp.dot(x, c_ref[...], preferred_element_type=jnp.float32)     # (nb*H, 3*CoWo)

    bias = b_ref[...]                                                   # (1, CoWo)

    # Stage 2: per image, apply the three row operators and accumulate (N = CoWo lanes).
    for n in range(nb):                                 # nb is small & static
        qn = q[n * H:(n + 1) * H, :]                    # sublane-aligned (H % 8 == 0)
        acc = jnp.dot(a_ref[0], qn[:, :CoWo],
                      preferred_element_type=jnp.float32)
        acc = acc + jnp.dot(a_ref[1], qn[:, CoWo:2 * CoWo],
                            preferred_element_type=jnp.float32)
        acc = acc + jnp.dot(a_ref[2], qn[:, 2 * CoWo:],
                            preferred_element_type=jnp.float32)
        # Single unmasked (2H, Co*2W) store per image.
        o_ref[pl.ds(n * Ho, Ho), :] = (acc + bias).astype(o_ref.dtype)


def upsample_conv_forward(x_nchw, w_oihw, bias, *, images_per_block=1):
    """NCHW in / NCHW out; matches UpsampleConv.forward (f32 compute).
    Note: conv weights/bias are folded into the C operator here, so re-fold (cheap
    einsum) whenever the weights change."""
    N, Ci, H, W = x_nchw.shape
    Co = w_oihw.shape[0]
    Ho, Wo = 2 * H, 2 * W
    nb = images_per_block
    assert N % nb == 0, "batch must be divisible by images_per_block"
    assert H % 8 == 0, "H should be a multiple of 8 for aligned row slabs"

    # Constant operators.
    Uh = _up2_matrix(H)
    Uw = _up2_matrix(W)
    A = jnp.asarray(np.stack([_shifted(Uh, d) for d in range(3)]))      # (3, 2H, H)
    B = jnp.asarray(np.stack([_shifted(Uw, d) for d in range(3)]))      # (3, 2W, W)

    # Fold conv weights into the column operator (host/XLA side, tiny einsum).
    #   C_wide[ci*W+w, dy*Co*Wo + co*Wo + wo] = sum_dx w[co,ci,dy,dx] * B[dx, wo, w]
    w_f32 = w_oihw.astype(jnp.float32)
    C_wide = jnp.einsum('oiyx,xuw->iwyou', w_f32, B).reshape(Ci * W, 3 * Co * Wo)
    b_slab = jnp.repeat(bias.astype(jnp.float32), Wo).reshape(1, Co * Wo)

    # Layout plumbing: channels fold into the contraction (in) / lane (out) axes.
    x2d = jnp.transpose(x_nchw, (0, 2, 1, 3)).reshape(N * H, Ci * W)   # rows = (n, h)

    out2d = pl.pallas_call(
        _upsample_conv_kernel,
        out_shape=jax.ShapeDtypeStruct((N * Ho, Co * Wo), x_nchw.dtype),
        grid_spec=pltpu.PrefetchScalarGridSpec(
            num_scalar_prefetch=0,
            grid=(N // nb,),
            in_specs=[
                pl.BlockSpec((nb * H, Ci * W), lambda g: (g, 0)),       # x rows
                pl.BlockSpec((3, Ho, H), lambda g: (0, 0, 0)),          # A (grid-invariant)
                pl.BlockSpec((Ci * W, 3 * Co * Wo), lambda g: (0, 0)),  # C (grid-invariant)
                pl.BlockSpec((1, Co * Wo), lambda g: (0, 0)),           # bias slab
            ],
            out_specs=pl.BlockSpec((nb * Ho, Co * Wo), lambda g: (g, 0)),
        ),
        compiler_params=pltpu.CompilerParams(
            dimension_semantics=("parallel",)),
    )(x2d, A, C_wide, b_slab)

    # (N*2H, Co*2W) -> NCHW.
    return jnp.transpose(out2d.reshape(N, Ho, Co, Wo), (0, 2, 1, 3))


# --------------------------------------------------------------------------
# Pure-JAX reference (torch semantics: bilinear x2 align_corners=False + conv pad=1).
# --------------------------------------------------------------------------
def _reference(x_nchw, w_oihw, bias):
    N, C, H, W = x_nchw.shape
    up = jax.image.resize(x_nchw, (N, C, 2 * H, 2 * W), method="bilinear")
    y = jax.lax.conv_general_dilated(
        up, w_oihw, window_strides=(1, 1), padding=((1, 1), (1, 1)),
        dimension_numbers=("NCHW", "OIHW", "NCHW"))
    return y + bias[None, :, None, None]


if __name__ == "__main__":
    N, C, H, W = 2, 4, 16, 16

    kx, kw, kb = jax.random.split(jax.random.PRNGKey(0), 3)
    fan_in = C * 3 * 3
    bound = 1.0 / (fan_in ** 0.5)
    w_oihw = jax.random.uniform(kw, (C, C, 3, 3), jnp.float32, -bound, bound)
    bias = jax.random.uniform(kb, (C,), jnp.float32, -bound, bound)
    x = jax.random.normal(kx, (N, C, H, W), jnp.float32)

    y = jax.block_until_ready(upsample_conv_forward(x, w_oihw, bias))
    assert y.shape == (N, C, 2 * H, 2 * W), y.shape

    y_ref = jax.block_until_ready(_reference(x, w_oihw, bias))
    err = float(jnp.max(jnp.abs(y - y_ref)))
    assert err < 1e-3, f"max abs error vs reference: {err}"

    print("KERNEL_OK")
</pallas_src>

<mosaic_0001>
module attributes {stable_mosaic.version = 11 : i64} {
  func.func @_upsample_conv_kernel(%arg0: i32, %arg1: memref<16x64xf32, #tpu.memory_space<vmem>>, %arg2: memref<3x32x16xf32, #tpu.memory_space<vmem>>, %arg3: memref<64x384xf32, #tpu.memory_space<vmem>>, %arg4: memref<1x128xf32, #tpu.memory_space<vmem>>, %arg5: memref<32x128xf32, #tpu.memory_space<vmem>>) attributes {dimension_semantics = [#tpu.dimension_semantics<parallel>], iteration_bounds = array<i64: 2>, scalar_prefetch = 0 : i64, scratch_operands = 0 : i64, tpu.core_type = #tpu.core_type<tc>, window_params = [{transform_indices = @transform_0, window_bounds = array<i64: 16, 64>}, {pipeline_mode = #tpu.pipeline_mode<synchronous>, transform_indices = @transform_1, window_bounds = array<i64: 3, 32, 16>}, {pipeline_mode = #tpu.pipeline_mode<synchronous>, transform_indices = @transform_2, window_bounds = array<i64: 64, 384>}, {pipeline_mode = #tpu.pipeline_mode<synchronous>, transform_indices = @transform_3, window_bounds = array<i64: 1, 128>}, {transform_indices = @transform_4, window_bounds = array<i64: 32, 128>}]} {
    %c0 = arith.constant 0 : index
    %c0_0 = arith.constant 0 : index
    %0 = vector.load %arg1[%c0, %c0_0] : memref<16x64xf32, #tpu.memory_space<vmem>>, vector<16x64xf32>
    %c0_1 = arith.constant 0 : index
    %c0_2 = arith.constant 0 : index
    %1 = vector.load %arg3[%c0_1, %c0_2] : memref<64x384xf32, #tpu.memory_space<vmem>>, vector<64x384xf32>
    %cst = arith.constant dense<0.000000e+00> : vector<16x384xf32>
    %2 = tpu.matmul %0, %1, %cst {dimension_numbers = #tpu.dot_dimension_numbers<[1], [0], [0], [1], [0, 0, 1, 1], [], []>} : vector<16x64xf32>, vector<64x384xf32>, vector<16x384xf32> -> vector<16x384xf32>
    %c0_3 = arith.constant 0 : index
    %c0_4 = arith.constant 0 : index
    %3 = vector.load %arg4[%c0_3, %c0_4] : memref<1x128xf32, #tpu.memory_space<vmem>>, vector<1x128xf32>
    %c0_5 = arith.constant 0 : index
    %c0_6 = arith.constant 0 : index
    %c0_7 = arith.constant 0 : index
    %4 = vector.load %arg2[%c0_5, %c0_6, %c0_7] : memref<3x32x16xf32, #tpu.memory_space<vmem>>, vector<1x32x16xf32>
    %5 = vector.shape_cast %4 : vector<1x32x16xf32> to vector<32x16xf32>
    %6 = vector.extract_strided_slice %2 {offsets = [0, 0], sizes = [16, 128], strides = [1, 1]} : vector<16x384xf32> to vector<16x128xf32>
    %cst_8 = arith.constant dense<0.000000e+00> : vector<32x128xf32>
    %7 = tpu.matmul %5, %6, %cst_8 {dimension_numbers = #tpu.dot_dimension_numbers<[1], [0], [0], [1], [0, 0, 1, 1], [], []>} : vector<32x16xf32>, vector<16x128xf32>, vector<32x128xf32> -> vector<32x128xf32>
    %c1 = arith.constant 1 : index
    %c0_9 = arith.constant 0 : index
    %c0_10 = arith.constant 0 : index
    %8 = vector.load %arg2[%c1, %c0_9, %c0_10] : memref<3x32x16xf32, #tpu.memory_space<vmem>>, vector<1x32x16xf32>
    %9 = vector.shape_cast %8 : vector<1x32x16xf32> to vector<32x16xf32>
    %10 = vector.extract_strided_slice %2 {offsets = [0, 128], sizes = [16, 128], strides = [1, 1]} : vector<16x384xf32> to vector<16x128xf32>
    %cst_11 = arith.constant dense<0.000000e+00> : vector<32x128xf32>
    %11 = tpu.matmul %9, %10, %cst_11 {dimension_numbers = #tpu.dot_dimension_numbers<[1], [0], [0], [1], [0, 0, 1, 1], [], []>} : vector<32x16xf32>, vector<16x128xf32>, vector<32x128xf32> -> vector<32x128xf32>
    %12 = arith.addf %7, %11 : vector<32x128xf32>
    %c2 = arith.constant 2 : index
    %c0_12 = arith.constant 0 : index
    %c0_13 = arith.constant 0 : index
    %13 = vector.load %arg2[%c2, %c0_12, %c0_13] : memref<3x32x16xf32, #tpu.memory_space<vmem>>, vector<1x32x16xf32>
    %14 = vector.shape_cast %13 : vector<1x32x16xf32> to vector<32x16xf32>
    %15 = vector.extract_strided_slice %2 {offsets = [0, 256], sizes = [16, 128], strides = [1, 1]} : vector<16x384xf32> to vector<16x128xf32>
    %cst_14 = arith.constant dense<0.000000e+00> : vector<32x128xf32>
    %16 = tpu.matmul %14, %15, %cst_14 {dimension_numbers = #tpu.dot_dimension_numbers<[1], [0], [0], [1], [0, 0, 1, 1], [], []>} : vector<32x16xf32>, vector<16x128xf32>, vector<32x128xf32> -> vector<32x128xf32>
    %17 = arith.addf %12, %16 : vector<32x128xf32>
    %18 = vector.broadcast %3 : vector<1x128xf32> to vector<32x128xf32>
    %19 = arith.addf %17, %18 : vector<32x128xf32>
    %c0_15 = arith.constant 0 : index
    %c0_16 = arith.constant 0 : index
    %20 = vector.load %arg5[%c0_15, %c0_16] : memref<32x128xf32, #tpu.memory_space<vmem>>, vector<32x128xf32>
    tpu.vector_store %arg5[%c0_15, %c0_16], %19 {strides = array<i32>} : memref<32x128xf32, #tpu.memory_space<vmem>>, vector<32x128xf32>,
    return
  }
  func.func @transform_0(%arg0: i32) -> (i32, i32) {
    %c0_i32 = arith.constant 0 : i32
    %c0_i32_0 = arith.constant 0 : i32
    return %arg0, %c0_i32 : i32, i32
  }
  func.func @transform_1(%arg0: i32) -> (i32, i32, i32) {
    %c0_i32 = arith.constant 0 : i32
    %c0_i32_0 = arith.constant 0 : i32
    %c0_i32_1 = arith.constant 0 : i32
    %c0_i32_2 = arith.constant 0 : i32
    return %c0_i32, %c0_i32_0, %c0_i32_1 : i32, i32, i32
  }
  func.func @transform_2(%arg0: i32) -> (i32, i32) {
    %c0_i32 = arith.constant 0 : i32
    %c0_i32_0 = arith.constant 0 : i32
    %c0_i32_1 = arith.constant 0 : i32
    return %c0_i32, %c0_i32_0 : i32, i32
  }
  func.func @transform_3(%arg0: i32) -> (i32, i32) {
    %c0_i32 = arith.constant 0 : i32
    %c0_i32_0 = arith.constant 0 : i32
    %c0_i32_1 = arith.constant 0 : i32
    return %c0_i32, %c0_i32_0 : i32, i32
  }
  func.func @transform_4(%arg0: i32) -> (i32, i32) {
    %c0_i32 = arith.constant 0 : i32
    %c0_i32_0 = arith.constant 0 : i32
    return %arg0, %c0_i32 : i32, i32
  }
}

</mosaic_0001>

<llo_original>
// kernel: tpu_custom_call.1
$region0: #{tpu_custom_call.1}
  #allocation0 [shape = 'u32[]', space=smem, size = 0x4, offset = 0x4, fixed_abs, tag = 'smem constant byte address 0x4 - core index']
  #allocation1 [shape = 'u32[144,128]{1,0:T(1,128)}', space=vmem, size = 0x12000, scoped, tag = 'internal scratch']
  %s0 = inlined_call_operand.vmem [shape: f32[32,64], index: 0, kind: input, shape index: {}]
  %s1 = inlined_call_operand.vmem [shape: f32[3,32,16], index: 1, kind: input, shape index: {}]
  %s2 = inlined_call_operand.hbm [shape: f32[64,384], index: 2, kind: input, shape index: {}]
  %s3 = inlined_call_operand.vmem [shape: f32[1,128], index: 3, kind: input, shape index: {}]
  %s4 = inlined_call_operand.hbm [shape: f32[64,128], index: 4, kind: output, shape index: {}]
  %s5 = sld [smem:[#allocation0]]
  $region53: #{tpu_custom_call.1} parent=0
    _
  %s7 = ssub.s32 1, %s5
  %s8 = scalar_select 0, %s7, %s5
  $region1: #{tpu_custom_call.1} parent=0
    #allocation2 [shape = 'u8[98304]{0}', space=vmem, size = 0x18000, scoped, tag = 'input window, operand 2, single buffered']
    #allocation3 [shape = 's32[2]{0}', space=sflag, size = 0x8, scoped, tag = 'scoped memory for tpu_custom_call.1']
    #allocation4 [shape = 's32[2]{0}', space=sflag, size = 0x8, scoped, tag = 'scoped memory for tpu_custom_call.1']
    #allocation5 [shape = 'u8[32768]{0}', space=vmem, size = 0x8000, scoped, tag = 'output window, operand 0']
    %9 = vsyncpa [#allocation3], 0
    %10 = vsyncpa [#allocation4], 0
    %s11 = scalar_lea.sflag [#allocation4], 1
    %12 = vsyncpa %s11, 0
    loop: start=0, step=1, limit=4
    $region2: #{tpu_custom_call.1} parent=1 // loop_pre_header
      _
    $region3: #{tpu_custom_call.1} parent=1 // loop_header
      %s14 = sphi 0, %s18
      %p15 = scmp.ge.s32.totalorder %s14, 4
      %s24 = sphi 0, %s26
      %s27 = sphi 0, %s24
      %s28 = sphi 0, %s27
      %s44 = sphi 0, %s28
      %s48 = sphi 0, %s48
      %s50 = sphi 0, %s48
      %s51 = sphi 0, %s50
      %s65 = sphi 0, %s51
      %s69 = sphi 0, %s69
      %s71 = sphi 0, %s69
      %s72 = sphi 0, %s71
      %s86 = sphi 0, %s72
      %s90 = sphi 0, %s90
      %s92 = sphi 0, %s90
      %s93 = sphi 0, %s92
      %s107 = sphi 0, %s93
      %s113 = sphi 0, %s115
      %s116 = sphi 0, %s113
      %s117 = sphi 0, %s116
      %s133 = sphi 0, %s117
    $region4: #{tpu_custom_call.1} parent=1 // loop_header_branch
      %17 = sbr.rel (%p15) target = $region8
    $region5: #{tpu_custom_call.1} parent=1 // loop_body
      %s19 = ssub.s32 %s14, 1
      %s20 = ssub.s32 %s14, 2
      %s21 = sadd.s32 %s14, 1
      %s22 = ssub.s32 %s14, %s21
      %p23 = scmp.eq.s32.totalorder %s22, 0
      %s25 = sadd.s32 %s24, 1
      %s26 = scalar_select %p23, %s24, %s25
      %p29 = pneg %p23
      %p30 = scmp.eq.s32.totalorder %s14, 1
      %p31 = por %p29, %p30
      %p32 = scmp.ne.s32.totalorder %s24, %s27
      %p33 = scmp.eq.s32.totalorder %s14, 0
      %p34 = por %p32, %p33
      %p35 = scmp.ne.s32.totalorder %s24, %s27
      %p36 = scmp.eq.s32.totalorder %s19, 1
      %p37 = por %p35, %p36
      %p38 = scmp.ne.s32.totalorder %s27, %s28
      %p39 = scmp.eq.s32.totalorder %s19, 0
      %p40 = por %p38, %p39
      %p41 = scmp.ne.s32.totalorder %s27, %s28
      %p42 = scmp.eq.s32.totalorder %s20, 1
      %p43 = por %p41, %p42
      %p45 = scmp.ne.s32.totalorder %s28, %s44
      %p46 = scmp.eq.s32.totalorder %s20, 0
      %p47 = por %p45, %p46
      %s49 = sadd.s32 %s48, 1
      %p52 = scmp.eq.s32.totalorder %s14, 1
      %p53 = scmp.ne.s32.totalorder %s48, %s50
      %p54 = scmp.eq.s32.totalorder %s14, 0
      %p55 = por %p53, %p54
      %p56 = scmp.ne.s32.totalorder %s48, %s50
      %p57 = scmp.eq.s32.totalorder %s19, 1
      %p58 = por %p56, %p57
      %p59 = scmp.ne.s32.totalorder %s50, %s51
      %p60 = scmp.eq.s32.totalorder %s19, 0
      %p61 = por %p59, %p60
      %p62 = scmp.ne.s32.totalorder %s50, %s51
      %p63 = scmp.eq.s32.totalorder %s20, 1
      %p64 = por %p62, %p63
      %p66 = scmp.ne.s32.totalorder %s51, %s65
      %p67 = scmp.eq.s32.totalorder %s20, 0
      %p68 = por %p66, %p67
      %s70 = sadd.s32 %s69, 1
      %p73 = scmp.eq.s32.totalorder %s14, 1
      %p74 = scmp.ne.s32.totalorder %s69, %s71
      %p75 = scmp.eq.s32.totalorder %s14, 0
      %p76 = por %p74, %p75
      %p77 = scmp.ne.s32.totalorder %s69, %s71
      %p78 = scmp.eq.s32.totalorder %s19, 1
      %p79 = por %p77, %p78
      %p80 = scmp.ne.s32.totalorder %s71, %s72
      %p81 = scmp.eq.s32.totalorder %s19, 0
      %p82 = por %p80, %p81
      %p83 = scmp.ne.s32.totalorder %s71, %s72
      %p84 = scmp.eq.s32.totalorder %s20, 1
      %p85 = por %p83, %p84
      %p87 = scmp.ne.s32.totalorder %s72, %s86
      %p88 = scmp.eq.s32.totalorder %s20, 0
      %p89 = por %p87, %p88
      %s91 = sadd.s32 %s90, 1
      %p94 = scmp.eq.s32.totalorder %s14, 1
      %p95 = scmp.ne.s32.totalorder %s90, %s92
      %p96 = scmp.eq.s32.totalorder %s14, 0
      %p97 = por %p95, %p96
      %p98 = scmp.ne.s32.totalorder %s90, %s92
      %p99 = scmp.eq.s32.totalorder %s19, 1
      %p100 = por %p98, %p99
      %p101 = scmp.ne.s32.totalorder %s92, %s93
      %p102 = scmp.eq.s32.totalorder %s19, 0
      %p103 = por %p101, %p102
      %p104 = scmp.ne.s32.totalorder %s92, %s93
      %p105 = scmp.eq.s32.totalorder %s20, 1
      %p106 = por %p104, %p105
      %p108 = scmp.ne.s32.totalorder %s93, %s107
      %p109 = scmp.eq.s32.totalorder %s20, 0
      %p110 = por %p108, %p109
      %s111 = ssub.s32 %s14, %s21
      %p112 = scmp.eq.s32.totalorder %s111, 0
      %s114 = sadd.s32 %s113, 1
      %s115 = scalar_select %p112, %s113, %s114
      %p118 = pneg %p112
      %p119 = scmp.eq.s32.totalorder %s14, 1
      %p120 = por %p118, %p119
      %p121 = scmp.ne.s32.totalorder %s113, %s116
      %p122 = scmp.eq.s32.totalorder %s14, 0
      %p123 = por %p121, %p122
      %p124 = scmp.ne.s32.totalorder %s113, %s116
      %p125 = scmp.eq.s32.totalorder %s19, 1
      %p126 = por %p124, %p125
      %p127 = scmp.ne.s32.totalorder %s116, %s117
      %p128 = scmp.eq.s32.totalorder %s19, 0
      %p129 = por %p127, %p128
      %p130 = scmp.ne.s32.totalorder %s116, %s117
      %p131 = scmp.eq.s32.totalorder %s20, 1
      %p132 = por %p130, %p131
      %p134 = scmp.ne.s32.totalorder %s117, %s133
      %p135 = scmp.eq.s32.totalorder %s20, 0
      %p136 = por %p134, %p135
      %p137 = scmp.le.s32.totalorder 1, %s14
      %p138 = scmp.lt.s32.totalorder %s14, 3
      %p139 = pnand %p137, %p138
      %p140 = pneg %p139
      // Predicated region
      $region9: #{tpu_custom_call.1} parent=5 // pred_check
        _
      $region10: #{tpu_custom_call.1} parent=5 // pred_check_branch
        %142 = sbr.rel (%p139) target = $region12
      $region11: #{tpu_custom_call.1} parent=5 // pred_region
        %s143 = ssub.s32 %s14, 1
        // Predicated region
        $region13: #{tpu_custom_call.1} parent=11 // pred_check
          %p144 = pneg %p61
        $region14: #{tpu_custom_call.1} parent=11 // pred_check_branch
          %146 = sbr.rel (%p144) target = $region16
        $region15: #{tpu_custom_call.1} parent=11 // pred_region
          _
        $region16: #{tpu_custom_call.1} parent=11 // pred_fallthru
          _
        // Predicated region
        $region17: #{tpu_custom_call.1} parent=11 // pred_check
          %p147 = pneg %p82
        $region18: #{tpu_custom_call.1} parent=11 // pred_check_branch
          %149 = sbr.rel (%p147) target = $region20
        $region19: #{tpu_custom_call.1} parent=11 // pred_region
          %s151 = ssub.s32 3072, 3072
          %152 = vsyncadd [#allocation3], %s151
          %s153 = sshll.u32 [#allocation2], 4
          %s154 = int_to_ptr.vmem [resolvable:$true] %s153
          %159 = dma.hbm_to_vmem [thread:$0]  %s2, 3072, %s154, [#allocation3], 384, 384, 24
        $region20: #{tpu_custom_call.1} parent=11 // pred_fallthru
          _
        // Predicated region
        $region21: #{tpu_custom_call.1} parent=11 // pred_check
          %p160 = pneg %p103
        $region22: #{tpu_custom_call.1} parent=11 // pred_check_branch
          %162 = sbr.rel (%p160) target = $region24
        $region23: #{tpu_custom_call.1} parent=11 // pred_region
          _
        $region24: #{tpu_custom_call.1} parent=11 // pred_fallthru
          _
      $region12: #{tpu_custom_call.1} parent=5 // pred_fallthru
        _
      %p163 = scmp.lt.s32.totalorder %s14, 2
      // Predicated region
      $region25: #{tpu_custom_call.1} parent=5 // pred_check
        %p164 = pneg %p163
      $region26: #{tpu_custom_call.1} parent=5 // pred_check_branch
        %166 = sbr.rel (%p164) target = $region28
      $region27: #{tpu_custom_call.1} parent=5 // pred_region
        // Predicated region
        $region29: #{tpu_custom_call.1} parent=27 // pred_check
          %p167 = pneg %p34
        $region30: #{tpu_custom_call.1} parent=27 // pred_check_branch
          %169 = sbr.rel (%p167) target = $region32
        $region31: #{tpu_custom_call.1} parent=27 // pred_region
          %s170 = smul.u32 2, %s14
          %p171 = scmp.lt.s32.totalorder %s170, 3
          %s172 = scalar_select %p171, %s170, 3
          %s173 = smul.addr %s172, 8
          %s174 = scalar_lea.vmem %s0, %s173
          %s175 = smul.u32 2, %s14
        $region32: #{tpu_custom_call.1} parent=27 // pred_fallthru
          _
      $region28: #{tpu_custom_call.1} parent=5 // pred_fallthru
        _
      %p176 = scmp.le.s32.totalorder 1, %s14
      %p177 = scmp.lt.s32.totalorder %s14, 3
      %p178 = pnand %p176, %p177
      %p179 = pneg %p178
      // Predicated region
      $region33: #{tpu_custom_call.1} parent=5 // pred_check
        _
      $region34: #{tpu_custom_call.1} parent=5 // pred_check_branch
        %181 = sbr.rel (%p178) target = $region36
      $region35: #{tpu_custom_call.1} parent=5 // pred_region
        %s182 = ssub.s32 %s14, 1
        // Predicated region
        $region37: #{tpu_custom_call.1} parent=35 // pred_check
          %p183 = pneg %p82
        $region38: #{tpu_custom_call.1} parent=35 // pred_check_branch
          %185 = sbr.rel (%p183) target = $region40
        $region39: #{tpu_custom_call.1} parent=35 // pred_region
          %186 = dma.done [#allocation3], 3072
        $region40: #{tpu_custom_call.1} parent=35 // pred_fallthru
          _
        %s187 = smul.u32 2, %s19
        %p188 = scmp.lt.s32.totalorder %s187, 3
        %s189 = scalar_select %p188, %s187, 3
        %s190 = smul.addr %s189, 8
        %s191 = scalar_lea.vmem %s0, %s190
        %p192 = pneg %p40
        %p193 = pneg %p37
        %p194 = pneg %p61
        %p195 = pneg %p58
        %p196 = pneg %p82
        %p197 = pneg %p79
        %p198 = pneg %p103
        %p199 = pneg %p100
        %p200 = pneg %p129
        %p201 = pneg %p126
        %s202 = sand.u32 %s116, 1
        %s203 = scalar_lea.sflag [#allocation4], %s202
        %s204 = sand.u32 %s116, 1
        %s205 = smul.addr %s204, 32
        %s206 = scalar_lea.vmem [#allocation5], %s205
        %s207 = smul.u32 2, %s19
        %p208 = scmp.lt.s32.totalorder %s207, 3
        %s209 = scalar_select %p208, %s207, 3
        %s210 = smul.addr %s209, 8
        %s211 = scalar_lea.vmem %s0, %s210
        %s212 = smul.u32 2, %s19
        %s213 = smul.u32 4, %s19
        %v214 = vld [vmem:[%s211] sm:$0xff]
        %v215 = vld [vmem:[%s211 + $0x8] sm:$0xff]
        %v216 = vld [vmem:[#allocation2] sm:$0xff]
        %v217 = vld [vmem:[#allocation2 + $0x8] sm:$0xff]
        %v218 = vld [vmem:[#allocation2 + $0x10] sm:$0xff]
        %v219 = vld [vmem:[#allocation2 + $0x18] sm:$0xff]
        %v220 = vld [vmem:[#allocation2 + $0x20] sm:$0xff]
        %v221 = vld [vmem:[#allocation2 + $0x28] sm:$0xff]
        %v222 = vld [vmem:[#allocation2 + $0x30] sm:$0xff]
        %v223 = vld [vmem:[#allocation2 + $0x38] sm:$0xff]
        %v224 = vld [vmem:[#allocation2 + $0x40] sm:$0xff]
        %v225 = vld [vmem:[#allocation2 + $0x48] sm:$0xff]
        %v226 = vld [vmem:[#allocation2 + $0x50] sm:$0xff]
        %v227 = vld [vmem:[#allocation2 + $0x58] sm:$0xff]
        %v228 = vld [vmem:[#allocation2 + $0x60] sm:$0xff]
        %v229 = vld [vmem:[#allocation2 + $0x68] sm:$0xff]
        %v230 = vld [vmem:[#allocation2 + $0x70] sm:$0xff]
        %v231 = vld [vmem:[#allocation2 + $0x78] sm:$0xff]
        %v232 = vld [vmem:[#allocation2 + $0x80] sm:$0xff]
        %v233 = vld [vmem:[#allocation2 + $0x88] sm:$0xff]
        %v234 = vld [vmem:[#allocation2 + $0x90] sm:$0xff]
        %v235 = vld [vmem:[#allocation2 + $0x98] sm:$0xff]
        %v236 = vld [vmem:[#allocation2 + $0xa0] sm:$0xff]
        %v237 = vld [vmem:[#allocation2 + $0xa8] sm:$0xff]
        %v238 = vld [vmem:[#allocation2 + $0xb0] sm:$0xff]
        %v239 = vld [vmem:[#allocation2 + $0xb8] sm:$0xff]
        %vm240 = vcmask 523264
        %v242 = vsel %vm240, %v214, 0
        %v245 = vsel %vm240, %v215, 0
        %247 = vmatprep.subr.mxu0 %v217
        %248 = vmatpush1.msra.mxu0 %v216
        %249 = vmatprep.subr.mxu0 %v220
        %250 = vmatpush1.msra.mxu0 %v219
        %251 = vmatprep.subr.mxu0 %v223
        %252 = vmatpush1.msra.mxu0 %v222
        %253 = vmatprep.subr.mxu0 %v226
        %254 = vmatpush1.msra.mxu0 %v225
        %255 = vmatprep.subr.mxu0 %v229
        %256 = vmatpush1.msra.mxu0 %v228
        %257 = vmatprep.subr.mxu0 %v232
        %258 = vmatpush1.msra.mxu0 %v231
        %259 = vmatprep.subr.mxu0 %v235
        %260 = vmatpush1.msra.mxu0 %v234
        %261 = vmatprep.subr.mxu0 %v238
        %262 = vmatpush1.msra.mxu0 %v237
        %263 = vmatprep.subr.mxu0 0.0
        %264 = vmatpush1.msra.mxu0 0.0
        %265 = vmatprep.subr.mxu0 0.0
        %266 = vmatpush1.msra.mxu0 0.0
        %267 = vmatprep.subr.mxu0 0.0
        %268 = vmatpush1.msra.mxu0 0.0
        %269 = vmatprep.subr.mxu0 0.0
        %270 = vmatpush1.msra.mxu0 0.0
        %271 = vmatprep.subr.mxu0 0.0
        %272 = vmatpush1.msra.mxu0 0.0
        %273 = vmatprep.subr.mxu0 0.0
        %274 = vmatpush1.msra.mxu0 0.0
        %275 = vmatprep.subr.mxu0 0.0
        %276 = vmatpush1.msra.mxu0 0.0
        %277 = vmatprep.subr.mxu0 0.0
        %278 = vmatpush1.msra.mxu0 0.0
        %279 = vmatprep.subr.mxu0 0.0
        %280 = vmatpush1.msra.mxu0 0.0
        %281 = vmatprep.subr.mxu0 0.0
        %282 = vmatpush1.msra.mxu0 0.0
        %283 = vmatprep.subr.mxu0 0.0
        %284 = vmatpush1.msra.mxu0 0.0
        %285 = vmatprep.subr.mxu0 0.0
        %286 = vmatpush1.msra.mxu0 0.0
        %287 = vmatprep.subr.mxu0 0.0
        %288 = vmatpush1.msra.mxu0 0.0
        %289 = vmatprep.subr.mxu0 0.0
        %290 = vmatpush1.msra.mxu0 0.0
        %291 = vmatprep.subr.mxu0 0.0
        %292 = vmatpush1.msra.mxu0 0.0
        %293 = vmatprep.subr.mxu0 0.0
        %294 = vmatpush1.msra.mxu0 0.0
        %295 = vmatprep.subr.mxu0 0.0
        %296 = vmatpush1.msra.mxu0 0.0
        %297 = vmatprep.subr.mxu0 0.0
        %298 = vmatpush1.msra.mxu0 0.0
        %299 = vmatprep.subr.mxu0 0.0
        %300 = vmatpush1.msra.mxu0 0.0
        %301 = vmatprep.subr.mxu0 0.0
        %302 = vmatpush1.msra.mxu0 0.0
        %303 = vmatprep.subr.mxu0 0.0
        %304 = vmatpush1.msra.mxu0 0.0
        %305 = vmatprep.subr.mxu0 0.0
        %306 = vmatpush1.msra.mxu0 0.0
        %307 = vmatprep.subr.mxu0 0.0
        %308 = vmatpush1.msra.mxu0 0.0
        %309 = vmatprep.subr.mxu0 0.0
        %310 = vmatpush1.msra.mxu0 0.0
        %311 = vmatprep.mubr.f32.mxu0 0.0
        %312 = vmatmul.mubr.f32.gmra.mrb[0].mxu0 %v242
        %v313 = vpop.f32.mrb[0].mxu0
        %v314 = vadd.f32 0.0, %v313
        %v315 = vpop.f32.mrb[0].mxu0
        %v316 = vadd.f32 0.0, %v315
        %317 = vmatprep.mubr.f32.mxu0 0.0
        %318 = vmatmul.mubr.f32.gmra.mrb[0].mxu0 %v245
        %v319 = vpop.f32.mrb[0].mxu0
        %v320 = vadd.f32 0.0, %v319
        %v321 = vpop.f32.mrb[0].mxu0
        %v322 = vadd.f32 0.0, %v321
        %323 = vdwg.mxu0
        %324 = vmatprep.subr.mxu0 0.0
        %325 = vmatpush1.msra.mxu0 %v218
        %326 = vmatprep.subr.mxu0 0.0
        %327 = vmatpush1.msra.mxu0 %v221
        %328 = vmatprep.subr.mxu0 0.0
        %329 = vmatpush1.msra.mxu0 %v224
        %330 = vmatprep.subr.mxu0 0.0
        %331 = vmatpush1.msra.mxu0 %v227
        %332 = vmatprep.subr.mxu0 0.0
        %333 = vmatpush1.msra.mxu0 %v230
        %334 = vmatprep.subr.mxu0 0.0
        %335 = vmatpush1.msra.mxu0 %v233
        %336 = vmatprep.subr.mxu0 0.0
        %337 = vmatpush1.msra.mxu0 %v236
        %338 = vmatprep.subr.mxu0 0.0
        %339 = vmatpush1.msra.mxu0 %v239
        %340 = vmatprep.subr.mxu0 0.0
        %341 = vmatpush1.msra.mxu0 0.0
        %342 = vmatprep.subr.mxu0 0.0
        %343 = vmatpush1.msra.mxu0 0.0
        %344 = vmatprep.subr.mxu0 0.0
        %345 = vmatpush1.msra.mxu0 0.0
        %346 = vmatprep.subr.mxu0 0.0
        %347 = vmatpush1.msra.mxu0 0.0
        %348 = vmatprep.subr.mxu0 0.0
        %349 = vmatpush1.msra.mxu0 0.0
        %350 = vmatprep.subr.mxu0 0.0
        %351 = vmatpush1.msra.mxu0 0.0
        %352 = vmatprep.subr.mxu0 0.0
        %353 = vmatpush1.msra.mxu0 0.0
        %354 = vmatprep.subr.mxu0 0.0
        %355 = vmatpush1.msra.mxu0 0.0
        %356 = vmatprep.subr.mxu0 0.0
        %357 = vmatpush1.msra.mxu0 0.0
        %358 = vmatprep.subr.mxu0 0.0
        %359 = vmatpush1.msra.mxu0 0.0
        %360 = vmatprep.subr.mxu0 0.0
        %361 = vmatpush1.msra.mxu0 0.0
        %362 = vmatprep.subr.mxu0 0.0
        %363 = vmatpush1.msra.mxu0 0.0
        %364 = vmatprep.subr.mxu0 0.0
        %365 = vmatpush1.msra.mxu0 0.0
        %366 = vmatprep.subr.mxu0 0.0
        %367 = vmatpush1.msra.mxu0 0.0
        %368 = vmatprep.subr.mxu0 0.0
        %369 = vmatpush1.msra.mxu0 0.0
        %370 = vmatprep.subr.mxu0 0.0
        %371 = vmatpush1.msra.mxu0 0.0
        %372 = vmatprep.subr.mxu0 0.0
        %373 = vmatpush1.msra.mxu0 0.0
        %374 = vmatprep.subr.mxu0 0.0
        %375 = vmatpush1.msra.mxu0 0.0
        %376 = vmatprep.subr.mxu0 0.0
        %377 = vmatpush1.msra.mxu0 0.0
        %378 = vmatprep.subr.mxu0 0.0
        %379 = vmatpush1.msra.mxu0 0.0
        %380 = vmatprep.subr.mxu0 0.0
        %381 = vmatpush1.msra.mxu0 0.0
        %382 = vmatprep.subr.mxu0 0.0
        %383 = vmatpush1.msra.mxu0 0.0
        %384 = vmatprep.subr.mxu0 0.0
        %385 = vmatpush1.msra.mxu0 0.0
        %386 = vmatprep.subr.mxu0 0.0
        %387 = vmatpush1.msra.mxu0 0.0
        %388 = vmatprep.mubr.f32.mxu0 0.0
        %389 = vmatmul.mubr.f32.gmra.mrb[0].mxu0 %v242
        %v390 = vpop.f32.mrb[0].mxu0
        %v391 = vadd.f32 0.0, %v390
        %v392 = vpop.f32.mrb[0].mxu0
        %393 = vmatprep.mubr.f32.mxu0 0.0
        %394 = vmatmul.mubr.f32.gmra.mrb[0].mxu0 %v245
        %v395 = vpop.f32.mrb[0].mxu0
        %v396 = vadd.f32 0.0, %v395
        %v397 = vpop.f32.mrb[0].mxu0
        %398 = vdwg.mxu0
        %v399 = vld [vmem:[%s3] sm:$0x1]
        %v400 = vld [vmem:[%s1] sm:$0xff]
        %v401 = vld [vmem:[%s1 + $0x8] sm:$0xff]
        %v402 = vld [vmem:[%s1 + $0x10] sm:$0xff]
        %v403 = vld [vmem:[%s1 + $0x18] sm:$0xff]
        %s404 = scalar_lea.vmem %s1, 32
        %v405 = vld [vmem:[%s404] sm:$0xff]
        %v406 = vld [vmem:[%s404 + $0x8] sm:$0xff]
        %v407 = vld [vmem:[%s404 + $0x10] sm:$0xff]
        %v408 = vld [vmem:[%s404 + $0x18] sm:$0xff]
        %vm409 = vcmask 130048
        %v411 = vsel %vm409, %v405, 0
        %v414 = vsel %vm409, %v406, 0
        %v417 = vsel %vm409, %v407, 0
        %v420 = vsel %vm409, %v408, 0
        %422 = vmatprep.subr.mxu0 0.0
        %423 = vmatpush1.msra.mxu0 %v316
        %424 = vmatprep.subr.mxu0 0.0
        %425 = vmatpush1.msra.mxu0 %v322
        %426 = vmatprep.subr.mxu0 0.0
        %427 = vmatpush1.msra.mxu0 0.0
        %428 = vmatprep.subr.mxu0 0.0
        %429 = vmatpush1.msra.mxu0 0.0
        %430 = vmatprep.subr.mxu0 0.0
        %431 = vmatpush1.msra.mxu0 0.0
        %432 = vmatprep.subr.mxu0 0.0
        %433 = vmatpush1.msra.mxu0 0.0
        %434 = vmatprep.subr.mxu0 0.0
        %435 = vmatpush1.msra.mxu0 0.0
        %436 = vmatprep.subr.mxu0 0.0
        %437 = vmatpush1.msra.mxu0 0.0
        %438 = vmatprep.subr.mxu0 0.0
        %439 = vmatpush1.msra.mxu0 0.0
        %440 = vmatprep.subr.mxu0 0.0
        %441 = vmatpush1.msra.mxu0 0.0
        %442 = vmatprep.subr.mxu0 0.0
        %443 = vmatpush1.msra.mxu0 0.0
        %444 = vmatprep.subr.mxu0 0.0
        %445 = vmatpush1.msra.mxu0 0.0
        %446 = vmatprep.subr.mxu0 0.0
        %447 = vmatpush1.msra.mxu0 0.0
        %448 = vmatprep.subr.mxu0 0.0
        %449 = vmatpush1.msra.mxu0 0.0
        %450 = vmatprep.subr.mxu0 0.0
        %451 = vmatpush1.msra.mxu0 0.0
        %452 = vmatprep.subr.mxu0 0.0
        %453 = vmatpush1.msra.mxu0 0.0
        %454 = vmatprep.subr.mxu0 0.0
        %455 = vmatpush1.msra.mxu0 0.0
        %456 = vmatprep.subr.mxu0 0.0
        %457 = vmatpush1.msra.mxu0 0.0
        %458 = vmatprep.subr.mxu0 0.0
        %459 = vmatpush1.msra.mxu0 0.0
        %460 = vmatprep.subr.mxu0 0.0
        %461 = vmatpush1.msra.mxu0 0.0
        %462 = vmatprep.subr.mxu0 0.0
        %463 = vmatpush1.msra.mxu0 0.0
        %464 = vmatprep.subr.mxu0 0.0
        %465 = vmatpush1.msra.mxu0 0.0
        %466 = vmatprep.subr.mxu0 0.0
        %467 = vmatpush1.msra.mxu0 0.0
        %468 = vmatprep.subr.mxu0 0.0
        %469 = vmatpush1.msra.mxu0 0.0
        %470 = vmatprep.subr.mxu0 0.0
        %471 = vmatpush1.msra.mxu0 0.0
        %472 = vmatprep.subr.mxu0 0.0
        %473 = vmatpush1.msra.mxu0 0.0
        %474 = vmatprep.subr.mxu0 0.0
        %475 = vmatpush1.msra.mxu0 0.0
        %476 = vmatprep.subr.mxu0 0.0
        %477 = vmatpush1.msra.mxu0 0.0
        %478 = vmatprep.subr.mxu0 0.0
        %479 = vmatpush1.msra.mxu0 0.0
        %480 = vmatprep.subr.mxu0 0.0
        %481 = vmatpush1.msra.mxu0 0.0
        %482 = vmatprep.subr.mxu0 0.0
        %483 = vmatpush1.msra.mxu0 0.0
        %484 = vmatprep.subr.mxu0 0.0
        %485 = vmatpush1.msra.mxu0 0.0
        %486 = vmatprep.mubr.f32.mxu0 0.0
        %487 = vmatmul.mubr.f32.gmra.mrb[0].mxu0 %v411
        %v488 = vpop.f32.mrb[0].mxu0
        %v489 = vadd.f32 0.0, %v488
        %v490 = vpop.f32.mrb[0].mxu0
        %491 = vmatprep.mubr.f32.mxu0 0.0
        %492 = vmatmul.mubr.f32.gmra.mrb[0].mxu0 %v414
        %v493 = vpop.f32.mrb[0].mxu0
        %v494 = vadd.f32 0.0, %v493
        %v495 = vpop.f32.mrb[0].mxu0
        %496 = vmatprep.mubr.f32.mxu0 0.0
        %497 = vmatmul.mubr.f32.gmra.mrb[0].mxu0 %v417
        %v498 = vpop.f32.mrb[0].mxu0
        %v499 = vadd.f32 0.0, %v498
        %v500 = vpop.f32.mrb[0].mxu0
        %501 = vmatprep.mubr.f32.mxu0 0.0
        %502 = vmatmul.mubr.f32.gmra.mrb[0].mxu0 %v420
        %v503 = vpop.f32.mrb[0].mxu0
        %v504 = vadd.f32 0.0, %v503
        %v505 = vpop.f32.mrb[0].mxu0
        %506 = vdwg.mxu0
        %v508 = vsel %vm409, %v400, 0
        %v511 = vsel %vm409, %v401, 0
        %v514 = vsel %vm409, %v402, 0
        %v517 = vsel %vm409, %v403, 0
        %519 = vmatprep.subr.mxu0 0.0
        %520 = vmatpush1.msra.mxu0 %v314
        %521 = vmatprep.subr.mxu0 0.0
        %522 = vmatpush1.msra.mxu0 %v320
        %523 = vmatprep.subr.mxu0 0.0
        %524 = vmatpush1.msra.mxu0 0.0
        %525 = vmatprep.subr.mxu0 0.0
        %526 = vmatpush1.msra.mxu0 0.0
        %527 = vmatprep.subr.mxu0 0.0
        %528 = vmatpush1.msra.mxu0 0.0
        %529 = vmatprep.subr.mxu0 0.0
        %530 = vmatpush1.msra.mxu0 0.0
        %531 = vmatprep.subr.mxu0 0.0
        %532 = vmatpush1.msra.mxu0 0.0
        %533 = vmatprep.subr.mxu0 0.0
        %534 = vmatpush1.msra.mxu0 0.0
        %535 = vmatprep.subr.mxu0 0.0
        %536 = vmatpush1.msra.mxu0 0.0
        %537 = vmatprep.subr.mxu0 0.0
        %538 = vmatpush1.msra.mxu0 0.0
        %539 = vmatprep.subr.mxu0 0.0
        %540 = vmatpush1.msra.mxu0 0.0
        %541 = vmatprep.subr.mxu0 0.0
        %542 = vmatpush1.msra.mxu0 0.0
        %543 = vmatprep.subr.mxu0 0.0
        %544 = vmatpush1.msra.mxu0 0.0
        %545 = vmatprep.subr.mxu0 0.0
        %546 = vmatpush1.msra.mxu0 0.0
        %547 = vmatprep.subr.mxu0 0.0
        %548 = vmatpush1.msra.mxu0 0.0
        %549 = vmatprep.subr.mxu0 0.0
        %550 = vmatpush1.msra.mxu0 0.0
        %551 = vmatprep.subr.mxu0 0.0
        %552 = vmatpush1.msra.mxu0 0.0
        %553 = vmatprep.subr.mxu0 0.0
        %554 = vmatpush1.msra.mxu0 0.0
        %555 = vmatprep.subr.mxu0 0.0
        %556 = vmatpush1.msra.mxu0 0.0
        %557 = vmatprep.subr.mxu0 0.0
        %558 = vmatpush1.msra.mxu0 0.0
        %559 = vmatprep.subr.mxu0 0.0
        %560 = vmatpush1.msra.mxu0 0.0
        %561 = vmatprep.subr.mxu0 0.0
        %562 = vmatpush1.msra.mxu0 0.0
        %563 = vmatprep.subr.mxu0 0.0
        %564 = vmatpush1.msra.mxu0 0.0
        %565 = vmatprep.subr.mxu0 0.0
        %566 = vmatpush1.msra.mxu0 0.0
        %567 = vmatprep.subr.mxu0 0.0
        %568 = vmatpush1.msra.mxu0 0.0
        %569 = vmatprep.subr.mxu0 0.0
        %570 = vmatpush1.msra.mxu0 0.0
        %571 = vmatprep.subr.mxu0 0.0
        %572 = vmatpush1.msra.mxu0 0.0
        %573 = vmatprep.subr.mxu0 0.0
        %574 = vmatpush1.msra.mxu0 0.0
        %575 = vmatprep.subr.mxu0 0.0
        %576 = vmatpush1.msra.mxu0 0.0
        %577 = vmatprep.subr.mxu0 0.0
        %578 = vmatpush1.msra.mxu0 0.0
        %579 = vmatprep.subr.mxu0 0.0
        %580 = vmatpush1.msra.mxu0 0.0
        %581 = vmatprep.subr.mxu0 0.0
        %582 = vmatpush1.msra.mxu0 0.0
        %583 = vmatprep.mubr.f32.mxu0 0.0
        %584 = vmatmul.mubr.f32.gmra.mrb[0].mxu0 %v508
        %v585 = vpop.f32.mrb[0].mxu0
        %v586 = vadd.f32 %v489, %v585
        %v587 = vpop.f32.mrb[0].mxu0
        %588 = vmatprep.mubr.f32.mxu0 0.0
        %589 = vmatmul.mubr.f32.gmra.mrb[0].mxu0 %v511
        %v590 = vpop.f32.mrb[0].mxu0
        %v591 = vadd.f32 %v494, %v590
        %v592 = vpop.f32.mrb[0].mxu0
        %593 = vmatprep.mubr.f32.mxu0 0.0
        %594 = vmatmul.mubr.f32.gmra.mrb[0].mxu0 %v514
        %v595 = vpop.f32.mrb[0].mxu0
        %v596 = vadd.f32 %v499, %v595
        %v597 = vpop.f32.mrb[0].mxu0
        %598 = vmatprep.mubr.f32.mxu0 0.0
        %599 = vmatmul.mubr.f32.gmra.mrb[0].mxu0 %v517
        %v600 = vpop.f32.mrb[0].mxu0
        %v601 = vadd.f32 %v504, %v600
        %v602 = vpop.f32.mrb[0].mxu0
        %603 = vdwg.mxu0
        %s604 = scalar_lea.vmem %s1, 64
        %v605 = vld [vmem:[%s604] sm:$0xff]
        %v606 = vld [vmem:[%s604 + $0x8] sm:$0xff]
        %v607 = vld [vmem:[%s604 + $0x10] sm:$0xff]
        %v608 = vld [vmem:[%s604 + $0x18] sm:$0xff]
        %v610 = vsel %vm409, %v605, 0
        %v613 = vsel %vm409, %v606, 0
        %v616 = vsel %vm409, %v607, 0
        %v619 = vsel %vm409, %v608, 0
        %621 = vmatprep.subr.mxu0 0.0
        %622 = vmatpush1.msra.mxu0 %v391
        %623 = vmatprep.subr.mxu0 0.0
        %624 = vmatpush1.msra.mxu0 %v396
        %625 = vmatprep.subr.mxu0 0.0
        %626 = vmatpush1.msra.mxu0 0.0
        %627 = vmatprep.subr.mxu0 0.0
        %628 = vmatpush1.msra.mxu0 0.0
        %629 = vmatprep.subr.mxu0 0.0
        %630 = vmatpush1.msra.mxu0 0.0
        %631 = vmatprep.subr.mxu0 0.0
        %632 = vmatpush1.msra.mxu0 0.0
        %633 = vmatprep.subr.mxu0 0.0
        %634 = vmatpush1.msra.mxu0 0.0
        %635 = vmatprep.subr.mxu0 0.0
        %636 = vmatpush1.msra.mxu0 0.0
        %637 = vmatprep.subr.mxu0 0.0
        %638 = vmatpush1.msra.mxu0 0.0
        %639 = vmatprep.subr.mxu0 0.0
        %640 = vmatpush1.msra.mxu0 0.0
        %641 = vmatprep.subr.mxu0 0.0
        %642 = vmatpush1.msra.mxu0 0.0
        %643 = vmatprep.subr.mxu0 0.0
        %644 = vmatpush1.msra.mxu0 0.0
        %645 = vmatprep.subr.mxu0 0.0
        %646 = vmatpush1.msra.mxu0 0.0
        %647 = vmatprep.subr.mxu0 0.0
        %648 = vmatpush1.msra.mxu0 0.0
        %649 = vmatprep.subr.mxu0 0.0
        %650 = vmatpush1.msra.mxu0 0.0
        %651 = vmatprep.subr.mxu0 0.0
        %652 = vmatpush1.msra.mxu0 0.0
        %653 = vmatprep.subr.mxu0 0.0
        %654 = vmatpush1.msra.mxu0 0.0
        %655 = vmatprep.subr.mxu0 0.0
        %656 = vmatpush1.msra.mxu0 0.0
        %657 = vmatprep.subr.mxu0 0.0
        %658 = vmatpush1.msra.mxu0 0.0
        %659 = vmatprep.subr.mxu0 0.0
        %660 = vmatpush1.msra.mxu0 0.0
        %661 = vmatprep.subr.mxu0 0.0
        %662 = vmatpush1.msra.mxu0 0.0
        %663 = vmatprep.subr.mxu0 0.0
        %664 = vmatpush1.msra.mxu0 0.0
        %665 = vmatprep.subr.mxu0 0.0
        %666 = vmatpush1.msra.mxu0 0.0
        %667 = vmatprep.subr.mxu0 0.0
        %668 = vmatpush1.msra.mxu0 0.0
        %669 = vmatprep.subr.mxu0 0.0
        %670 = vmatpush1.msra.mxu0 0.0
        %671 = vmatprep.subr.mxu0 0.0
        %672 = vmatpush1.msra.mxu0 0.0
        %673 = vmatprep.subr.mxu0 0.0
        %674 = vmatpush1.msra.mxu0 0.0
        %675 = vmatprep.subr.mxu0 0.0
        %676 = vmatpush1.msra.mxu0 0.0
        %677 = vmatprep.subr.mxu0 0.0
        %678 = vmatpush1.msra.mxu0 0.0
        %679 = vmatprep.subr.mxu0 0.0
        %680 = vmatpush1.msra.mxu0 0.0
        %681 = vmatprep.subr.mxu0 0.0
        %682 = vmatpush1.msra.mxu0 0.0
        %683 = vmatprep.subr.mxu0 0.0
        %684 = vmatpush1.msra.mxu0 0.0
        %685 = vmatprep.mubr.f32.mxu0 0.0
        %686 = vmatmul.mubr.f32.gmra.mrb[0].mxu0 %v610
        %v687 = vpop.f32.mrb[0].mxu0
        %v688 = vadd.f32 0.0, %v687
        %v689 = vpop.f32.mrb[0].mxu0
        %690 = vmatprep.mubr.f32.mxu0 0.0
        %691 = vmatmul.mubr.f32.gmra.mrb[0].mxu0 %v613
        %v692 = vpop.f32.mrb[0].mxu0
        %v693 = vadd.f32 0.0, %v692
        %v694 = vpop.f32.mrb[0].mxu0
        %695 = vmatprep.mubr.f32.mxu0 0.0
        %696 = vmatmul.mubr.f32.gmra.mrb[0].mxu0 %v616
        %v697 = vpop.f32.mrb[0].mxu0
        %v698 = vadd.f32 0.0, %v697
        %v699 = vpop.f32.mrb[0].mxu0
        %700 = vmatprep.mubr.f32.mxu0 0.0
        %701 = vmatmul.mubr.f32.gmra.mrb[0].mxu0 %v619
        %v702 = vpop.f32.mrb[0].mxu0
        %v703 = vadd.f32 0.0, %v702
        %v704 = vpop.f32.mrb[0].mxu0
        %705 = vdwg.mxu0
        %v706 = vadd.f32 %v586, %v688
        %v707 = vadd.f32 %v591, %v693
        %v708 = vadd.f32 %v596, %v698
        %v709 = vadd.f32 %v601, %v703
        %v711 = vlaneseq
        %v712 = vshrl.u32 %v711, 7
        %v713 = vsub.s32 0, %v712
        %v714 = vrot.slane %v399, %v713
        %v716 = vadd.f32 %v706, %v714
        %v717 = vadd.f32 %v707, %v714
        %v718 = vadd.f32 %v708, %v714
        %v719 = vadd.f32 %v709, %v714
        %720 = vst [vmem:[%s206] sm:$0xff] %v716
        %721 = vst [vmem:[%s206 + $0x8] sm:$0xff] %v717
        %722 = vst [vmem:[%s206 + $0x10] sm:$0xff] %v718
        %723 = vst [vmem:[%s206 + $0x18] sm:$0xff] %v719
        %s724 = sand.u32 %s116, 1
        %s725 = scalar_lea.sflag [#allocation4], %s724
        %s726 = sand.u32 %s116, 1
        %s727 = smul.addr %s726, 32
        %s728 = scalar_lea.vmem [#allocation5], %s727
        // Predicated region
        $region41: #{tpu_custom_call.1} parent=35 // pred_check
          %p729 = pneg %p126
        $region42: #{tpu_custom_call.1} parent=35 // pred_check_branch
          %731 = sbr.rel (%p729) target = $region44
        $region43: #{tpu_custom_call.1} parent=35 // pred_region
          %s732 = smul.u32 4, %s19
          %s734 = ssub.s32 512, 512
          %735 = vsyncadd %s725, %s734
          %s736 = smul.addr %s732, 128
          %s737 = scalar_lea.hbm %s4, %s736
          %s738 = sshll.u32 %s728, 4
          %s739 = int_to_ptr.vmem [resolvable:$true] %s738
          %744 = dma.vmem_to_hbm [thread:$0]  %s739, 512, %s737, %s725, 128, 128, 8
        $region44: #{tpu_custom_call.1} parent=35 // pred_fallthru
          _
      $region36: #{tpu_custom_call.1} parent=5 // pred_fallthru
        _
      %p745 = scmp.le.s32.totalorder 2, %s14
      // Predicated region
      $region45: #{tpu_custom_call.1} parent=5 // pred_check
        %p746 = pneg %p745
      $region46: #{tpu_custom_call.1} parent=5 // pred_check_branch
        %748 = sbr.rel (%p746) target = $region48
      $region47: #{tpu_custom_call.1} parent=5 // pred_region
        %s749 = ssub.s32 %s14, 2
        // Predicated region
        $region49: #{tpu_custom_call.1} parent=47 // pred_check
          %p750 = pneg %p132
        $region50: #{tpu_custom_call.1} parent=47 // pred_check_branch
          %752 = sbr.rel (%p750) target = $region52
        $region51: #{tpu_custom_call.1} parent=47 // pred_region
          %s753 = sand.u32 %s117, 1
          %s754 = scalar_lea.sflag [#allocation4], %s753
          %s755 = sand.u32 %s117, 1
          %s756 = smul.addr %s755, 32
          %s757 = scalar_lea.vmem [#allocation5], %s756
          %758 = dma.done %s754, 512
        $region52: #{tpu_custom_call.1} parent=47 // pred_fallthru
          _
      $region48: #{tpu_custom_call.1} parent=5 // pred_fallthru
        _
    $region6: #{tpu_custom_call.1} parent=1 // loop_footer
      %s18 = sadd.s32 1, %s14
    $region7: #{tpu_custom_call.1} parent=1 // loop_footer_branch
      %13 = sbr.rel target = $region3
    $region8: #{tpu_custom_call.1} parent=1 // loop_exit
      _
    %759 = vsyncpa [#allocation3], 1
    %s760 = scalar_lea.sflag [#allocation3], 1
    %761 = vsyncpa %s760, 1
    %762 = vsyncpa [#allocation4], 1
    %s763 = scalar_lea.sflag [#allocation4], 1
    %764 = vsyncpa %s763, 1

</llo_original>
